<compile_context>
chip_gen: v7x
topology: tpu7x:2x2x1
jax: 0.10.0
libtpu: 0.0.40
codegen_flags: <defaults>
</compile_context>

<pallas_src>
import math

import jax
import jax.numpy as jnp
from jax.experimental import pallas as pl
from jax.experimental.pallas import tpu as pltpu

_LANE = 128


def _round_up(x, m):
    return ((x + m - 1) // m) * m


def _sublane_multiple(itemsize):
    # f32 -> 8 rows/vreg, bf16 -> 16, int8/fp8 -> 32 (sublane packing).
    return max(8, 32 // max(int(itemsize), 1))


def _make_kernel(n_parts):
    """Kernel over one batch tile: sum_i x_i @ w_i + b, f32 accumulation."""

    def kernel(*refs):
        # refs layout: x_0..x_{n-1}, w_0..w_{n-1}, b, o
        x_refs = refs[:n_parts]
        w_refs = refs[n_parts:2 * n_parts]
        b_ref = refs[2 * n_parts]
        o_ref = refs[2 * n_parts + 1]

        acc = jnp.dot(x_refs[0][...], w_refs[0][...],
                      preferred_element_type=jnp.float32)
        for i in range(1, n_parts):
            acc = acc + jnp.dot(x_refs[i][...], w_refs[i][...],
                                preferred_element_type=jnp.float32)
        acc = acc + b_ref[...].astype(jnp.float32)
        o_ref[...] = acc.astype(o_ref.dtype)

    return kernel


def _vmem_capacity_bytes():
    try:
        return int(pltpu.get_tpu_info().vmem_capacity_bytes)
    except Exception:
        return 64 << 20  # conservative fallback (v7x per-TC physical VMEM)


def _fixed_vmem_bytes(widths, out_dim, itemsize, sublane):
    """VMEM of the grid-resident weight/bias blocks (budgeted double-buffered)."""
    wgt = sum(_round_up(h, sublane) * _round_up(out_dim, _LANE) for h in widths)
    bias = sublane * _round_up(out_dim, _LANE)
    return 2 * (wgt + bias) * itemsize


def _per_row_vmem_bytes(widths, out_dim, itemsize):
    """Lane-padded, double-buffered activation + output VMEM bytes per tile row."""
    act = sum(_round_up(h, _LANE) for h in widths)
    out = _round_up(out_dim, _LANE)
    return 2 * (act + out) * itemsize


def _pick_block_rows(batch, widths, out_dim, itemsize, sublane, budget_bytes):
    fixed = _fixed_vmem_bytes(widths, out_dim, itemsize, sublane)
    per_row = _per_row_vmem_bytes(widths, out_dim, itemsize)
    avail = max(budget_bytes - fixed, per_row * sublane)
    tb = (avail // per_row) // sublane * sublane
    tb = max(sublane, min(int(tb), 8192))
    # Keep >= 2 grid steps when the batch allows it so ("parallel",) can shard
    # across v7x's two TensorCores; the extra step is noise on v5e/v6e.
    two_step = _round_up(pl.cdiv(batch, 2), sublane)
    tb = min(tb, max(two_step, sublane))
    tb = min(tb, _round_up(batch, sublane))
    return int(tb)


def match_head(x, weight, bias, *, block_rows=None, force_pallas=False):
    """Pallas implementation of MatchHead.forward (y = x @ W^T + b, OUT=2).

    x: (B, Hin) array, or a list/tuple of arrays whose widths sum to Hin
       (use_concat_decoder path — the concat is fused into the kernel and never
       materialized in HBM).
    weight: (OUT, Hin), bias: (OUT,) — nn.Linear layout.
    """
    parts = list(x) if isinstance(x, (list, tuple)) else [x]
    dtype = parts[0].dtype
    B = int(parts[0].shape[0])
    widths = [int(p.shape[1]) for p in parts]
    total_in = sum(widths)

    out_dim, w_in = weight.shape
    assert w_in == total_in, (
        f"feature mismatch: x has {total_in}, weight expects {w_in}")

    itemsize = jnp.dtype(dtype).itemsize
    sublane = _sublane_multiple(itemsize)

    # Mixed-precision policy: params cast to activation dtype; f32 accumulate.
    w = weight.astype(dtype)

    # Small-shape fast path: the fixed pallas_call launch + DMA cost dominates
    # ~2*B*Hin FLOPs; a plain jnp expression lets XLA fuse it upstream.
    if not force_pallas and B * total_in * itemsize < (1 << 17):
        acc = bias.astype(jnp.float32)[None, :]
        off = 0
        for p, h in zip(parts, widths):
            acc = acc + jnp.dot(p, jnp.transpose(w[:, off:off + h]),
                                preferred_element_type=jnp.float32)
            off += h
        return acc.astype(dtype)

    # Split the weight per input part and pre-transpose to (h, OUT) once in the
    # wrapper (negligible next to activation traffic).
    w_parts = []
    off = 0
    for h in widths:
        w_parts.append(jnp.transpose(w[:, off:off + h]))  # (h, OUT)
        off += h
    b2d = bias.astype(dtype).reshape(1, out_dim)

    cap = _vmem_capacity_bytes()
    budget = max(8 << 20, int(cap * 0.45) - (4 << 20))
    if block_rows is None:
        tb = _pick_block_rows(B, widths, out_dim, itemsize, sublane, budget)
    else:
        tb = max(sublane, _round_up(int(block_rows), sublane))

    footprint = (_fixed_vmem_bytes(widths, out_dim, itemsize, sublane)
                 + tb * _per_row_vmem_bytes(widths, out_dim, itemsize))
    vmem_limit = int(min(int(cap * 0.8),
                         max(32 << 20, footprint + (4 << 20))))

    n_parts = len(parts)
    # No wrapper-side padding: ragged last block is clipped by Pallas, garbage
    # rows are row-independent, and OOB output stores are dropped.
    grid = (pl.cdiv(B, tb),)

    in_specs = []
    # Activations: tiled over the batch, pipelined tile-by-tile.
    in_specs += [pl.BlockSpec((tb, h), lambda i: (i, 0)) for h in widths]
    # Weights: constant block index -> stay VMEM-resident across the grid.
    in_specs += [pl.BlockSpec((h, out_dim), lambda i: (0, 0)) for h in widths]
    # Bias: constant block index -> VMEM-resident.
    in_specs += [pl.BlockSpec((1, out_dim), lambda i: (0, 0))]

    out = pl.pallas_call(
        _make_kernel(n_parts),
        out_shape=jax.ShapeDtypeStruct((B, out_dim), dtype),
        grid=grid,
        in_specs=in_specs,
        out_specs=pl.BlockSpec((tb, out_dim), lambda i: (i, 0)),
        compiler_params=pltpu.CompilerParams(
            dimension_semantics=("parallel",),
            vmem_limit_bytes=vmem_limit),
    )(*parts, *w_parts, b2d)

    return out


def init_linear_params(key, out_features, in_features, dtype=jnp.float32):
    """Deterministic init mirroring nn.Linear's default (uniform +-1/sqrt(fan_in))."""
    kw, kb = jax.random.split(key)
    bound = 1.0 / math.sqrt(in_features)
    weight = jax.random.uniform(kw, (out_features, in_features), dtype,
                                minval=-bound, maxval=bound)
    bias = jax.random.uniform(kb, (out_features,), dtype,
                              minval=-bound, maxval=bound)
    return weight, bias


if __name__ == "__main__":
    key = jax.random.PRNGKey(0)
    k_x1, k_x2, k_p, k_big = jax.random.split(key, 4)

    batch = 8
    hidden = 32
    use_concat_decoder = True

    in_features = 2 * hidden if use_concat_decoder else hidden
    weight, bias = init_linear_params(k_p, 2, in_features)

    # use_concat_decoder path: forward receives a list (concat fused in-kernel).
    x1 = jax.random.normal(k_x1, (batch, hidden), jnp.float32)
    x2 = jax.random.normal(k_x2, (batch, hidden), jnp.float32)
    x_list = [x1, x2]

    x_cat = jnp.concatenate(x_list, axis=1)
    ref = x_cat @ weight.T + bias

    # 1) Pallas path, list input (force past the small-shape fast path so the
    #    kernel itself is exercised).
    out = jax.block_until_ready(match_head(x_list, weight, bias,
                                           force_pallas=True))
    assert out.shape == (batch, 2)
    assert jnp.allclose(out, ref, atol=1e-5, rtol=1e-5), "mismatch (list path)"

    # 2) Pallas path, single-tensor input of full width.
    out2 = jax.block_until_ready(match_head(x_cat, weight, bias,
                                            force_pallas=True))
    assert jnp.allclose(out2, ref, atol=1e-5, rtol=1e-5), "mismatch (tensor path)"

    # 3) Ragged batch (B not a multiple of the sublane/row tile): exercises the
    #    clipped last block instead of a wrapper-side pad.
    out3 = jax.block_until_ready(match_head([x1[:5], x2[:5]], weight, bias,
                                            force_pallas=True))
    assert out3.shape == (5, 2)
    assert jnp.allclose(out3, ref[:5], atol=1e-5, rtol=1e-5), "mismatch (ragged)"

    # 4) Larger batch with an explicit row tile: multi-step pipelined grid
    #    (4 steps, ragged last block) and the "parallel" batch axis.
    Bb = 1000
    kb1, kb2 = jax.random.split(k_big)
    y1 = jax.random.normal(kb1, (Bb, hidden), jnp.float32)
    y2 = jax.random.normal(kb2, (Bb, hidden), jnp.float32)
    ref_big = jnp.concatenate([y1, y2], axis=1) @ weight.T + bias
    out4 = jax.block_until_ready(match_head([y1, y2], weight, bias,
                                            block_rows=256, force_pallas=True))
    assert out4.shape == (Bb, 2)
    assert jnp.allclose(out4, ref_big, atol=2e-5, rtol=2e-5), "mismatch (big batch)"

    # 5) Default small-shape fast path (no Pallas) stays numerically consistent.
    out5 = jax.block_until_ready(match_head(x_list, weight, bias))
    assert jnp.allclose(out5, ref, atol=1e-5, rtol=1e-5), "mismatch (fast path)"

    print("KERNEL_OK")
</pallas_src>

<mosaic_0001>
module attributes {stable_mosaic.version = 11 : i64} {
  func.func @kernel(%arg0: i32, %arg1: memref<8x32xf32, #tpu.memory_space<vmem>>, %arg2: memref<8x32xf32, #tpu.memory_space<vmem>>, %arg3: memref<32x2xf32, #tpu.memory_space<vmem>>, %arg4: memref<32x2xf32, #tpu.memory_space<vmem>>, %arg5: memref<1x2xf32, #tpu.memory_space<vmem>>, %arg6: memref<8x2xf32, #tpu.memory_space<vmem>>) attributes {dimension_semantics = [#tpu.dimension_semantics<parallel>], iteration_bounds = array<i64: 1>, scalar_prefetch = 0 : i64, scratch_operands = 0 : i64, tpu.core_type = #tpu.core_type<tc>, window_params = [{transform_indices = @transform_0, window_bounds = array<i64: 8, 32>}, {transform_indices = @transform_1, window_bounds = array<i64: 8, 32>}, {pipeline_mode = #tpu.pipeline_mode<synchronous>, transform_indices = @transform_2, window_bounds = array<i64: 32, 2>}, {pipeline_mode = #tpu.pipeline_mode<synchronous>, transform_indices = @transform_3, window_bounds = array<i64: 32, 2>}, {pipeline_mode = #tpu.pipeline_mode<synchronous>, transform_indices = @transform_4, window_bounds = array<i64: 1, 2>}, {transform_indices = @transform_5, window_bounds = array<i64: 8, 2>}]} {
    %c0 = arith.constant 0 : index
    %c0_0 = arith.constant 0 : index
    %0 = vector.load %arg1[%c0, %c0_0] : memref<8x32xf32, #tpu.memory_space<vmem>>, vector<8x32xf32>
    %c0_1 = arith.constant 0 : index
    %c0_2 = arith.constant 0 : index
    %1 = vector.load %arg3[%c0_1, %c0_2] : memref<32x2xf32, #tpu.memory_space<vmem>>, vector<32x2xf32>
    %cst = arith.constant dense<0.000000e+00> : vector<8x2xf32>
    %2 = tpu.matmul %0, %1, %cst {dimension_numbers = #tpu.dot_dimension_numbers<[1], [0], [0], [1], [0, 0, 1, 1], [], []>} : vector<8x32xf32>, vector<32x2xf32>, vector<8x2xf32> -> vector<8x2xf32>
    %c0_3 = arith.constant 0 : index
    %c0_4 = arith.constant 0 : index
    %3 = vector.load %arg2[%c0_3, %c0_4] : memref<8x32xf32, #tpu.memory_space<vmem>>, vector<8x32xf32>
    %c0_5 = arith.constant 0 : index
    %c0_6 = arith.constant 0 : index
    %4 = vector.load %arg4[%c0_5, %c0_6] : memref<32x2xf32, #tpu.memory_space<vmem>>, vector<32x2xf32>
    %cst_7 = arith.constant dense<0.000000e+00> : vector<8x2xf32>
    %5 = tpu.matmul %3, %4, %cst_7 {dimension_numbers = #tpu.dot_dimension_numbers<[1], [0], [0], [1], [0, 0, 1, 1], [], []>} : vector<8x32xf32>, vector<32x2xf32>, vector<8x2xf32> -> vector<8x2xf32>
    %6 = arith.addf %2, %5 : vector<8x2xf32>
    %c0_8 = arith.constant 0 : index
    %c0_9 = arith.constant 0 : index
    %7 = vector.load %arg5[%c0_8, %c0_9] : memref<1x2xf32, #tpu.memory_space<vmem>>, vector<1x2xf32>
    %8 = vector.broadcast %7 : vector<1x2xf32> to vector<8x2xf32>
    %9 = arith.addf %6, %8 : vector<8x2xf32>
    %c0_10 = arith.constant 0 : index
    %c0_11 = arith.constant 0 : index
    %10 = vector.load %arg6[%c0_10, %c0_11] : memref<8x2xf32, #tpu.memory_space<vmem>>, vector<8x2xf32>
    tpu.vector_store %arg6[%c0_10, %c0_11], %9 {strides = array<i32>} : memref<8x2xf32, #tpu.memory_space<vmem>>, vector<8x2xf32>,
    return
  }
  func.func @transform_0(%arg0: i32) -> (i32, i32) {
    %c0_i32 = arith.constant 0 : i32
    %c0_i32_0 = arith.constant 0 : i32
    return %arg0, %c0_i32 : i32, i32
  }
  func.func @transform_1(%arg0: i32) -> (i32, i32) {
    %c0_i32 = arith.constant 0 : i32
    %c0_i32_0 = arith.constant 0 : i32
    return %arg0, %c0_i32 : i32, i32
  }
  func.func @transform_2(%arg0: i32) -> (i32, i32) {
    %c0_i32 = arith.constant 0 : i32
    %c0_i32_0 = arith.constant 0 : i32
    %c0_i32_1 = arith.constant 0 : i32
    return %c0_i32, %c0_i32_0 : i32, i32
  }
  func.func @transform_3(%arg0: i32) -> (i32, i32) {
    %c0_i32 = arith.constant 0 : i32
    %c0_i32_0 = arith.constant 0 : i32
    %c0_i32_1 = arith.constant 0 : i32
    return %c0_i32, %c0_i32_0 : i32, i32
  }
  func.func @transform_4(%arg0: i32) -> (i32, i32) {
    %c0_i32 = arith.constant 0 : i32
    %c0_i32_0 = arith.constant 0 : i32
    %c0_i32_1 = arith.constant 0 : i32
    return %c0_i32, %c0_i32_0 : i32, i32
  }
  func.func @transform_5(%arg0: i32) -> (i32, i32) {
    %c0_i32 = arith.constant 0 : i32
    %c0_i32_0 = arith.constant 0 : i32
    return %arg0, %c0_i32 : i32, i32
  }
}

</mosaic_0001>

<llo_original>
// kernel: tpu_custom_call.1
$region0: #{tpu_custom_call.1}
  #allocation0 [shape = 'u32[]', space=smem, size = 0x4, offset = 0x4, fixed_abs, tag = 'smem constant byte address 0x4 - core index']
  #allocation1 [shape = 'u32[144,128]{1,0:T(1,128)}', space=vmem, size = 0x12000, scoped, tag = 'internal scratch']
  %s0 = inlined_call_operand.vmem [shape: f32[8,32], index: 0, kind: input, shape index: {}]
  %s1 = inlined_call_operand.vmem [shape: f32[8,32], index: 1, kind: input, shape index: {}]
  %s2 = inlined_call_operand.vmem [shape: f32[32,2], index: 2, kind: input, shape index: {}]
  %s3 = inlined_call_operand.vmem [shape: f32[32,2], index: 3, kind: input, shape index: {}]
  %s4 = inlined_call_operand.vmem [shape: f32[1,2], index: 4, kind: input, shape index: {}]
  %s5 = inlined_call_operand.vmem [shape: f32[8,2], index: 5, kind: output, shape index: {}]
  %s6 = sld [smem:[#allocation0]]
  $region30: #{tpu_custom_call.1} parent=0
    _
  %s8 = ssub.s32 1, %s6
  %s9 = scalar_select 0, %s8, %s6
  // Predicated region
  $region2: #{tpu_custom_call.1} parent=0 // pred_check
    _
  $region3: #{tpu_custom_call.1} parent=0 // pred_check_branch
    %11 = sbr.rel (0) target = $region5
  $region4: #{tpu_custom_call.1} parent=0 // pred_region
    _
  $region5: #{tpu_custom_call.1} parent=0 // pred_fallthru
    _
  // Predicated region
  $region6: #{tpu_custom_call.1} parent=0 // pred_check
    _
  $region7: #{tpu_custom_call.1} parent=0 // pred_check_branch
    %13 = sbr.rel (0) target = $region9
  $region8: #{tpu_custom_call.1} parent=0 // pred_region
    _
  $region9: #{tpu_custom_call.1} parent=0 // pred_fallthru
    _
  // Predicated region
  $region10: #{tpu_custom_call.1} parent=0 // pred_check
    _
  $region11: #{tpu_custom_call.1} parent=0 // pred_check_branch
    %15 = sbr.rel (0) target = $region13
  $region12: #{tpu_custom_call.1} parent=0 // pred_region
    _
  $region13: #{tpu_custom_call.1} parent=0 // pred_fallthru
    _
  // Predicated region
  $region14: #{tpu_custom_call.1} parent=0 // pred_check
    _
  $region15: #{tpu_custom_call.1} parent=0 // pred_check_branch
    %17 = sbr.rel (0) target = $region17
  $region16: #{tpu_custom_call.1} parent=0 // pred_region
    _
  $region17: #{tpu_custom_call.1} parent=0 // pred_fallthru
    _
  // Predicated region
  $region18: #{tpu_custom_call.1} parent=0 // pred_check
    _
  $region19: #{tpu_custom_call.1} parent=0 // pred_check_branch
    %19 = sbr.rel (0) target = $region21
  $region20: #{tpu_custom_call.1} parent=0 // pred_region
    _
  $region21: #{tpu_custom_call.1} parent=0 // pred_fallthru
    _
  %v20 = vld [vmem:[%s0] sm:$0xff]
  %v21 = vld [vmem:[%s2] sm:$0xff]
  %v22 = vld [vmem:[%s2 + $0x8] sm:$0xff]
  %v23 = vld [vmem:[%s2 + $0x10] sm:$0xff]
  %v24 = vld [vmem:[%s2 + $0x18] sm:$0xff]
  %v25 = vld [vmem:[%s1] sm:$0xff]
  %v26 = vld [vmem:[%s3] sm:$0xff]
  %v27 = vld [vmem:[%s3 + $0x8] sm:$0xff]
  %v28 = vld [vmem:[%s3 + $0x10] sm:$0xff]
  %v29 = vld [vmem:[%s3 + $0x18] sm:$0xff]
  %vm30 = vcmask 261120
  %v32 = vsel %vm30, %v25, 0
  %34 = vmatprep.subr.mxu0 0.0
  %35 = vmatpush1.msra.mxu0 %v26
  %36 = vmatprep.subr.mxu0 0.0
  %37 = vmatpush1.msra.mxu0 %v27
  %38 = vmatprep.subr.mxu0 0.0
  %39 = vmatpush1.msra.mxu0 %v28
  %40 = vmatprep.subr.mxu0 0.0
  %41 = vmatpush1.msra.mxu0 %v29
  %42 = vmatprep.subr.mxu0 0.0
  %43 = vmatpush1.msra.mxu0 0.0
  %44 = vmatprep.subr.mxu0 0.0
  %45 = vmatpush1.msra.mxu0 0.0
  %46 = vmatprep.subr.mxu0 0.0
  %47 = vmatpush1.msra.mxu0 0.0
  %48 = vmatprep.subr.mxu0 0.0
  %49 = vmatpush1.msra.mxu0 0.0
  %50 = vmatprep.subr.mxu0 0.0
  %51 = vmatpush1.msra.mxu0 0.0
  %52 = vmatprep.subr.mxu0 0.0
  %53 = vmatpush1.msra.mxu0 0.0
  %54 = vmatprep.subr.mxu0 0.0
  %55 = vmatpush1.msra.mxu0 0.0
  %56 = vmatprep.subr.mxu0 0.0
  %57 = vmatpush1.msra.mxu0 0.0
  %58 = vmatprep.subr.mxu0 0.0
  %59 = vmatpush1.msra.mxu0 0.0
  %60 = vmatprep.subr.mxu0 0.0
  %61 = vmatpush1.msra.mxu0 0.0
  %62 = vmatprep.subr.mxu0 0.0
  %63 = vmatpush1.msra.mxu0 0.0
  %64 = vmatprep.subr.mxu0 0.0
  %65 = vmatpush1.msra.mxu0 0.0
  %66 = vmatprep.subr.mxu0 0.0
  %67 = vmatpush1.msra.mxu0 0.0
  %68 = vmatprep.subr.mxu0 0.0
  %69 = vmatpush1.msra.mxu0 0.0
  %70 = vmatprep.subr.mxu0 0.0
  %71 = vmatpush1.msra.mxu0 0.0
  %72 = vmatprep.subr.mxu0 0.0
  %73 = vmatpush1.msra.mxu0 0.0
  %74 = vmatprep.subr.mxu0 0.0
  %75 = vmatpush1.msra.mxu0 0.0
  %76 = vmatprep.subr.mxu0 0.0
  %77 = vmatpush1.msra.mxu0 0.0
  %78 = vmatprep.subr.mxu0 0.0
  %79 = vmatpush1.msra.mxu0 0.0
  %80 = vmatprep.subr.mxu0 0.0
  %81 = vmatpush1.msra.mxu0 0.0
  %82 = vmatprep.subr.mxu0 0.0
  %83 = vmatpush1.msra.mxu0 0.0
  %84 = vmatprep.subr.mxu0 0.0
  %85 = vmatpush1.msra.mxu0 0.0
  %86 = vmatprep.subr.mxu0 0.0
  %87 = vmatpush1.msra.mxu0 0.0
  %88 = vmatprep.subr.mxu0 0.0
  %89 = vmatpush1.msra.mxu0 0.0
  %90 = vmatprep.subr.mxu0 0.0
  %91 = vmatpush1.msra.mxu0 0.0
  %92 = vmatprep.subr.mxu0 0.0
  %93 = vmatpush1.msra.mxu0 0.0
  %94 = vmatprep.subr.mxu0 0.0
  %95 = vmatpush1.msra.mxu0 0.0
  %96 = vmatprep.subr.mxu0 0.0
  %97 = vmatpush1.msra.mxu0 0.0
  %98 = vmatprep.mubr.f32.mxu0 0.0
  %99 = vmatmul.mubr.f32.gmra.mrb[0].mxu0 %v32
  %v100 = vpop.f32.mrb[0].mxu0
  %v101 = vadd.f32 0.0, %v100
  %v102 = vpop.f32.mrb[0].mxu0
  %103 = vdwg.mxu0
  %v105 = vsel %vm30, %v20, 0
  %107 = vmatprep.subr.mxu0 0.0
  %108 = vmatpush1.msra.mxu0 %v21
  %109 = vmatprep.subr.mxu0 0.0
  %110 = vmatpush1.msra.mxu0 %v22
  %111 = vmatprep.subr.mxu0 0.0
  %112 = vmatpush1.msra.mxu0 %v23
  %113 = vmatprep.subr.mxu0 0.0
  %114 = vmatpush1.msra.mxu0 %v24
  %115 = vmatprep.subr.mxu0 0.0
  %116 = vmatpush1.msra.mxu0 0.0
  %117 = vmatprep.subr.mxu0 0.0
  %118 = vmatpush1.msra.mxu0 0.0
  %119 = vmatprep.subr.mxu0 0.0
  %120 = vmatpush1.msra.mxu0 0.0
  %121 = vmatprep.subr.mxu0 0.0
  %122 = vmatpush1.msra.mxu0 0.0
  %123 = vmatprep.subr.mxu0 0.0
  %124 = vmatpush1.msra.mxu0 0.0
  %125 = vmatprep.subr.mxu0 0.0
  %126 = vmatpush1.msra.mxu0 0.0
  %127 = vmatprep.subr.mxu0 0.0
  %128 = vmatpush1.msra.mxu0 0.0
  %129 = vmatprep.subr.mxu0 0.0
  %130 = vmatpush1.msra.mxu0 0.0
  %131 = vmatprep.subr.mxu0 0.0
  %132 = vmatpush1.msra.mxu0 0.0
  %133 = vmatprep.subr.mxu0 0.0
  %134 = vmatpush1.msra.mxu0 0.0
  %135 = vmatprep.subr.mxu0 0.0
  %136 = vmatpush1.msra.mxu0 0.0
  %137 = vmatprep.subr.mxu0 0.0
  %138 = vmatpush1.msra.mxu0 0.0
  %139 = vmatprep.subr.mxu0 0.0
  %140 = vmatpush1.msra.mxu0 0.0
  %141 = vmatprep.subr.mxu0 0.0
  %142 = vmatpush1.msra.mxu0 0.0
  %143 = vmatprep.subr.mxu0 0.0
  %144 = vmatpush1.msra.mxu0 0.0
  %145 = vmatprep.subr.mxu0 0.0
  %146 = vmatpush1.msra.mxu0 0.0
  %147 = vmatprep.subr.mxu0 0.0
  %148 = vmatpush1.msra.mxu0 0.0
  %149 = vmatprep.subr.mxu0 0.0
  %150 = vmatpush1.msra.mxu0 0.0
  %151 = vmatprep.subr.mxu0 0.0
  %152 = vmatpush1.msra.mxu0 0.0
  %153 = vmatprep.subr.mxu0 0.0
  %154 = vmatpush1.msra.mxu0 0.0
  %155 = vmatprep.subr.mxu0 0.0
  %156 = vmatpush1.msra.mxu0 0.0
  %157 = vmatprep.subr.mxu0 0.0
  %158 = vmatpush1.msra.mxu0 0.0
  %159 = vmatprep.subr.mxu0 0.0
  %160 = vmatpush1.msra.mxu0 0.0
  %161 = vmatprep.subr.mxu0 0.0
  %162 = vmatpush1.msra.mxu0 0.0
  %163 = vmatprep.subr.mxu0 0.0
  %164 = vmatpush1.msra.mxu0 0.0
  %165 = vmatprep.subr.mxu0 0.0
  %166 = vmatpush1.msra.mxu0 0.0
  %167 = vmatprep.subr.mxu0 0.0
  %168 = vmatpush1.msra.mxu0 0.0
  %169 = vmatprep.subr.mxu0 0.0
  %170 = vmatpush1.msra.mxu0 0.0
  %171 = vmatprep.mubr.f32.mxu0 0.0
  %172 = vmatmul.mubr.f32.gmra.mrb[0].mxu0 %v105
  %v173 = vpop.f32.mrb[0].mxu0
  %v174 = vadd.f32 %v101, %v173
  %v175 = vpop.f32.mrb[0].mxu0
  %176 = vdwg.mxu0
  %v177 = vld [vmem:[%s4] sm:$0x1]
  %v179 = vlaneseq
  %v180 = vshrl.u32 %v179, 7
  %v181 = vsub.s32 0, %v180
  %v182 = vrot.slane %v177, %v181
  %v184 = vadd.f32 %v174, %v182
  %vm185 = vcmask 15360
  %186 = vst.msk [vmem:[%s5] sm:$0xff] %vm185, %v184
  // Predicated region
  $region22: #{tpu_custom_call.1} parent=0 // pred_check
    _
  $region23: #{tpu_custom_call.1} parent=0 // pred_check_branch
    %188 = sbr.rel (0) target = $region25
  $region24: #{tpu_custom_call.1} parent=0 // pred_region
    _
  $region25: #{tpu_custom_call.1} parent=0 // pred_fallthru
    _
  // Predicated region
  $region26: #{tpu_custom_call.1} parent=0 // pred_check
    _
  $region27: #{tpu_custom_call.1} parent=0 // pred_check_branch
    %190 = sbr.rel (0) target = $region29
  $region28: #{tpu_custom_call.1} parent=0 // pred_region
    _
  $region29: #{tpu_custom_call.1} parent=0 // pred_fallthru
    _

</llo_original>
